<compile_context>
chip_gen: v5e
topology: v5e:2x2
jax: 0.10.0
libtpu: 0.0.40
codegen_flags: <defaults>
</compile_context>

<pallas_src>
import functools

import jax
import jax.numpy as jnp
from jax.experimental import pallas as pl
from jax.experimental.pallas import tpu as pltpu

_LANE = 128
_SUBLANE = 8


def _round_up(n: int, m: int) -> int:
    return ((n + m - 1) // m) * m


def mlp_kernel(x_ref, w1_ref, b1_ref, w2_ref, b2_ref, o_ref):
    # fc1: bf16 MXU matmul, f32 accumulate; bias add + ReLU in f32 on the VPU
    # (v5e VPU has no bf16 path, so the epilogue stays f32 on all generations).
    h = jnp.dot(x_ref[...], w1_ref[...],
                preferred_element_type=jnp.float32) + b1_ref[...]
    h = jnp.maximum(h, 0.0)
    # fc2: w2 is stored f32, so the second dot stays f32 (no double-rounding of h).
    y = jnp.dot(h, w2_ref[...], preferred_element_type=jnp.float32) + b2_ref[...]
    # O_pad is a multiple of 128 -> unmasked lane-dense store; bf16 halves writeback.
    o_ref[...] = y.astype(o_ref.dtype)


def prepare_params(w1, b1, w2, b2, compute_dtype=jnp.bfloat16):
    """Pad / cast parameters ONCE, outside the per-call forward path.

    w1: (in, hidden), b1: (hidden,) or (1, hidden)
    w2: (hidden, out), b2: (out,) or (1, out)
    (PyTorch nn.Linear weights are (out, in); pass them pre-transposed here.)
    """
    K, H = w1.shape
    O = w2.shape[1]
    H_pad = _round_up(max(H, _LANE), _LANE)
    O_pad = _round_up(max(O, _LANE), _LANE)

    # Padded hidden columns get bias 0 -> relu(0)=0 and hit zero rows of w2,
    # so they contribute nothing; padded output columns are sliced off outside.
    w1p = jnp.zeros((K, H_pad), compute_dtype).at[:, :H].set(w1.astype(compute_dtype))
    b1p = jnp.zeros((1, H_pad), jnp.float32).at[:, :H].set(
        jnp.reshape(b1, (1, H)).astype(jnp.float32))
    w2p = jnp.zeros((H_pad, O_pad), jnp.float32).at[:H, :O].set(
        w2.astype(jnp.float32))
    b2p = jnp.zeros((1, O_pad), jnp.float32).at[:, :O].set(
        jnp.reshape(b2, (1, O)).astype(jnp.float32))
    return w1p, b1p, w2p, b2p, H, O


@functools.partial(
    jax.jit, static_argnames=("hidden_features", "out_features", "block_rows"))
def simple_behavioral_net(x, w1p, b1p, w2p, b2p, *, hidden_features,
                          out_features, block_rows=512):
    """Fused y = relu(x @ w1 + b1) @ w2 + b2 with pre-padded params."""
    B, K = x.shape
    H_pad = w1p.shape[1]
    O_pad = w2p.shape[1]
    compute_dtype = w1p.dtype
    H, O = hidden_features, out_features

    # Row tile: multiple of 8 (sublane); single grid step whenever B <= block_rows.
    block_rows = _round_up(block_rows, _SUBLANE)
    tm = min(_round_up(B, _SUBLANE), block_rows)
    B_pad = _round_up(B, tm)
    num_blocks = B_pad // tm

    # One pad op on x (no zeros buffer + scatter). Padded rows never reach [:B].
    xp = x.astype(compute_dtype)
    if B_pad != B:
        xp = jnp.pad(xp, ((0, B_pad - B), (0, 0)))

    # Advisory cost from TRUE (unpadded) sizes.
    cd_bytes = jnp.dtype(compute_dtype).itemsize
    flops = 2 * B * K * H + 2 * B * H * O
    bytes_accessed = (B * K * cd_bytes + K * H * cd_bytes + H * O * 4
                      + (H + O) * 4 + B * O * 2)

    # Only shard across TensorCores when there is real work per core.
    semantics = ("parallel",) if num_blocks >= 4 else ("arbitrary",)

    out_padded = pl.pallas_call(
        mlp_kernel,
        out_shape=jax.ShapeDtypeStruct((B_pad, O_pad), jnp.bfloat16),
        grid=(num_blocks,),
        in_specs=[
            # x: tiled along the batch grid axis (full-K block; K is NOT padded).
            pl.BlockSpec((tm, K), lambda i: (i, 0)),
            # Weights / biases: same block every step -> resident in VMEM.
            pl.BlockSpec((K, H_pad), lambda i: (0, 0)),
            pl.BlockSpec((1, H_pad), lambda i: (0, 0)),
            pl.BlockSpec((H_pad, O_pad), lambda i: (0, 0)),
            pl.BlockSpec((1, O_pad), lambda i: (0, 0)),
        ],
        out_specs=pl.BlockSpec((tm, O_pad), lambda i: (i, 0)),
        compiler_params=pltpu.CompilerParams(dimension_semantics=semantics),
        cost_estimate=pl.CostEstimate(
            flops=flops, transcendentals=0, bytes_accessed=bytes_accessed),
    )(xp, w1p, b1p, w2p, b2p)

    # Strip batch / output-lane padding and return f32 like the PyTorch module.
    return out_padded[:B, :O].astype(jnp.float32)


if __name__ == "__main__":
    input_size, hidden_size, output_size = 10, 20, 5
    batch = 32  # pads to a single 32-row grid step (multiple of 8 sublanes)

    key = jax.random.PRNGKey(0)
    kx, kw1, kb1, kw2, kb2 = jax.random.split(key, 5)

    x = jax.random.normal(kx, (batch, input_size), dtype=jnp.float32)
    # Weights stored pre-transposed: (in, hidden), (hidden, out).
    w1 = jax.random.normal(kw1, (input_size, hidden_size), dtype=jnp.float32) * 0.1
    b1 = jax.random.normal(kb1, (hidden_size,), dtype=jnp.float32) * 0.1
    w2 = jax.random.normal(kw2, (hidden_size, output_size), dtype=jnp.float32) * 0.1
    b2 = jax.random.normal(kb2, (output_size,), dtype=jnp.float32) * 0.1

    # Parameter padding / casts done once, outside the per-call path.
    w1p, b1p, w2p, b2p, H, O = prepare_params(w1, b1, w2, b2)

    out = simple_behavioral_net(x, w1p, b1p, w2p, b2p,
                                hidden_features=H, out_features=O)
    jax.block_until_ready(out)

    # Plain-JAX f32 reference. bf16 MXU operands / bf16 output -> ~2e-2 tolerance.
    ref = jnp.maximum(x @ w1 + b1, 0.0) @ w2 + b2
    assert out.shape == (batch, output_size)
    assert jnp.allclose(out, ref, atol=2e-2, rtol=2e-2), float(
        jnp.max(jnp.abs(out - ref)))

    print("KERNEL_OK")
</pallas_src>

<mosaic_0001>
module attributes {stable_mosaic.version = 11 : i64} {
  func.func @mlp_kernel(%arg0: i32, %arg1: memref<32x10xbf16, #tpu.memory_space<vmem>>, %arg2: memref<10x128xbf16, #tpu.memory_space<vmem>>, %arg3: memref<1x128xf32, #tpu.memory_space<vmem>>, %arg4: memref<128x128xf32, #tpu.memory_space<vmem>>, %arg5: memref<1x128xf32, #tpu.memory_space<vmem>>, %arg6: memref<32x128xbf16, #tpu.memory_space<vmem>>) attributes {dimension_semantics = [#tpu.dimension_semantics<arbitrary>], iteration_bounds = array<i64: 1>, scalar_prefetch = 0 : i64, scratch_operands = 0 : i64, tpu.core_type = #tpu.core_type<tc>, window_params = [{transform_indices = @transform_0, window_bounds = array<i64: 32, 10>}, {pipeline_mode = #tpu.pipeline_mode<synchronous>, transform_indices = @transform_1, window_bounds = array<i64: 10, 128>}, {pipeline_mode = #tpu.pipeline_mode<synchronous>, transform_indices = @transform_2, window_bounds = array<i64: 1, 128>}, {pipeline_mode = #tpu.pipeline_mode<synchronous>, transform_indices = @transform_3, window_bounds = array<i64: 128, 128>}, {pipeline_mode = #tpu.pipeline_mode<synchronous>, transform_indices = @transform_4, window_bounds = array<i64: 1, 128>}, {transform_indices = @transform_5, window_bounds = array<i64: 32, 128>}]} {
    %c0 = arith.constant 0 : index
    %c0_0 = arith.constant 0 : index
    %0 = vector.load %arg1[%c0, %c0_0] : memref<32x10xbf16, #tpu.memory_space<vmem>>, vector<32x10xbf16>
    %c0_1 = arith.constant 0 : index
    %c0_2 = arith.constant 0 : index
    %1 = vector.load %arg2[%c0_1, %c0_2] : memref<10x128xbf16, #tpu.memory_space<vmem>>, vector<10x128xbf16>
    %cst = arith.constant dense<0.000000e+00> : vector<32x128xf32>
    %2 = tpu.matmul %0, %1, %cst {dimension_numbers = #tpu.dot_dimension_numbers<[1], [0], [0], [1], [0, 0, 1, 1], [], []>} : vector<32x10xbf16>, vector<10x128xbf16>, vector<32x128xf32> -> vector<32x128xf32>
    %c0_3 = arith.constant 0 : index
    %c0_4 = arith.constant 0 : index
    %3 = vector.load %arg3[%c0_3, %c0_4] : memref<1x128xf32, #tpu.memory_space<vmem>>, vector<1x128xf32>
    %4 = vector.broadcast %3 : vector<1x128xf32> to vector<32x128xf32>
    %5 = arith.addf %2, %4 : vector<32x128xf32>
    %cst_5 = arith.constant 0.000000e+00 : f32
    %6 = vector.broadcast %cst_5 : f32 to vector<32x128xf32>
    %7 = arith.maximumf %5, %6 : vector<32x128xf32>
    %c0_6 = arith.constant 0 : index
    %c0_7 = arith.constant 0 : index
    %8 = vector.load %arg4[%c0_6, %c0_7] : memref<128x128xf32, #tpu.memory_space<vmem>>, vector<128x128xf32>
    %cst_8 = arith.constant dense<0.000000e+00> : vector<32x128xf32>
    %9 = tpu.matmul %7, %8, %cst_8 {dimension_numbers = #tpu.dot_dimension_numbers<[1], [0], [0], [1], [0, 0, 1, 1], [], []>} : vector<32x128xf32>, vector<128x128xf32>, vector<32x128xf32> -> vector<32x128xf32>
    %c0_9 = arith.constant 0 : index
    %c0_10 = arith.constant 0 : index
    %10 = vector.load %arg5[%c0_9, %c0_10] : memref<1x128xf32, #tpu.memory_space<vmem>>, vector<1x128xf32>
    %11 = vector.broadcast %10 : vector<1x128xf32> to vector<32x128xf32>
    %12 = arith.addf %9, %11 : vector<32x128xf32>
    %13 = arith.truncf %12 : vector<32x128xf32> to vector<32x128xbf16>
    %c0_11 = arith.constant 0 : index
    %c0_12 = arith.constant 0 : index
    %14 = vector.load %arg6[%c0_11, %c0_12] : memref<32x128xbf16, #tpu.memory_space<vmem>>, vector<32x128xbf16>
    tpu.vector_store %arg6[%c0_11, %c0_12], %13 {strides = array<i32>} : memref<32x128xbf16, #tpu.memory_space<vmem>>, vector<32x128xbf16>,
    return
  }
  func.func @transform_0(%arg0: i32) -> (i32, i32) {
    %c0_i32 = arith.constant 0 : i32
    %c0_i32_0 = arith.constant 0 : i32
    return %arg0, %c0_i32 : i32, i32
  }
  func.func @transform_1(%arg0: i32) -> (i32, i32) {
    %c0_i32 = arith.constant 0 : i32
    %c0_i32_0 = arith.constant 0 : i32
    %c0_i32_1 = arith.constant 0 : i32
    return %c0_i32, %c0_i32_0 : i32, i32
  }
  func.func @transform_2(%arg0: i32) -> (i32, i32) {
    %c0_i32 = arith.constant 0 : i32
    %c0_i32_0 = arith.constant 0 : i32
    %c0_i32_1 = arith.constant 0 : i32
    return %c0_i32, %c0_i32_0 : i32, i32
  }
  func.func @transform_3(%arg0: i32) -> (i32, i32) {
    %c0_i32 = arith.constant 0 : i32
    %c0_i32_0 = arith.constant 0 : i32
    %c0_i32_1 = arith.constant 0 : i32
    return %c0_i32, %c0_i32_0 : i32, i32
  }
  func.func @transform_4(%arg0: i32) -> (i32, i32) {
    %c0_i32 = arith.constant 0 : i32
    %c0_i32_0 = arith.constant 0 : i32
    %c0_i32_1 = arith.constant 0 : i32
    return %c0_i32, %c0_i32_0 : i32, i32
  }
  func.func @transform_5(%arg0: i32) -> (i32, i32) {
    %c0_i32 = arith.constant 0 : i32
    %c0_i32_0 = arith.constant 0 : i32
    return %arg0, %c0_i32 : i32, i32
  }
}

</mosaic_0001>

<llo_original>
// kernel: simple_behavioral_net.1
$region0: #{simple_behavioral_net.1}
  #allocation0 [shape = 'u32[]', space=smem, size = 0x4, offset = 0x4, fixed_abs, tag = 'smem constant byte address 0x4 - core index']
  #allocation1 [shape = 'u32[72,128]{1,0:T(1,128)}', space=vmem, size = 0x9000, scoped, tag = 'internal scratch']
  %s0 = inlined_call_operand.vmem [shape: bf16[32,10], index: 0, kind: input, shape index: {}]
  %s1 = inlined_call_operand.vmem [shape: bf16[10,128], index: 1, kind: input, shape index: {}]
  %s2 = inlined_call_operand.vmem [shape: f32[1,128], index: 2, kind: input, shape index: {}]
  %s3 = inlined_call_operand.hbm [shape: f32[128,128], index: 3, kind: input, shape index: {}]
  %s4 = inlined_call_operand.vmem [shape: f32[1,128], index: 4, kind: input, shape index: {}]
  %s5 = inlined_call_operand.vmem [shape: bf16[32,128], index: 5, kind: output, shape index: {}]
  %s6 = sld [smem:[#allocation0]]
  $region34: #{simple_behavioral_net.1} parent=0
    _
  %s8 = ssub.s32 1, %s6
  %s9 = scalar_select 0, %s8, %s6
  $region1: #{simple_behavioral_net.1} parent=0
    #allocation2 [shape = 'u8[65536]{0}', space=vmem, size = 0x10000, scoped, tag = 'input window, operand 3, single buffered']
    #allocation3 [shape = 's32[1]{0}', space=sflag, size = 0x4, scoped, tag = 'scoped memory for simple_behavioral_net.1']
    %10 = vsyncpa [#allocation3], 0
    // Predicated region
    $region2: #{simple_behavioral_net.1} parent=1 // pred_check
      _
    $region3: #{simple_behavioral_net.1} parent=1 // pred_check_branch
      %12 = sbr.rel (0) target = $region5
    $region4: #{simple_behavioral_net.1} parent=1 // pred_region
      _
    $region5: #{simple_behavioral_net.1} parent=1 // pred_fallthru
      _
    // Predicated region
    $region6: #{simple_behavioral_net.1} parent=1 // pred_check
      _
    $region7: #{simple_behavioral_net.1} parent=1 // pred_check_branch
      %14 = sbr.rel (0) target = $region9
    $region8: #{simple_behavioral_net.1} parent=1 // pred_region
      _
    $region9: #{simple_behavioral_net.1} parent=1 // pred_fallthru
      _
    // Predicated region
    $region10: #{simple_behavioral_net.1} parent=1 // pred_check
      _
    $region11: #{simple_behavioral_net.1} parent=1 // pred_check_branch
      %16 = sbr.rel (0) target = $region13
    $region12: #{simple_behavioral_net.1} parent=1 // pred_region
      _
    $region13: #{simple_behavioral_net.1} parent=1 // pred_fallthru
      _
    // Predicated region
    $region14: #{simple_behavioral_net.1} parent=1 // pred_check
      _
    $region15: #{simple_behavioral_net.1} parent=1 // pred_check_branch
      %18 = sbr.rel (0) target = $region17
    $region16: #{simple_behavioral_net.1} parent=1 // pred_region
      %20 = vsyncadd [#allocation3], 0
      %s21 = sshll.u32 %s3, 4
      %s22 = int_to_ptr.hbm [resolvable:$true] %s21
      %s23 = sshll.u32 [#allocation2], 4
      %s24 = int_to_ptr.vmem [resolvable:$true] %s23
      %29 = dma.hbm_to_vmem [thread:$0]  %s22, 2048, %s24, [#allocation3], 128, 128, 8
    $region17: #{simple_behavioral_net.1} parent=1 // pred_fallthru
      _
    // Predicated region
    $region18: #{simple_behavioral_net.1} parent=1 // pred_check
      _
    $region19: #{simple_behavioral_net.1} parent=1 // pred_check_branch
      %31 = sbr.rel (0) target = $region21
    $region20: #{simple_behavioral_net.1} parent=1 // pred_region
      _
    $region21: #{simple_behavioral_net.1} parent=1 // pred_fallthru
      _
    // Predicated region
    $region22: #{simple_behavioral_net.1} parent=1 // pred_check
      _
    $region23: #{simple_behavioral_net.1} parent=1 // pred_check_branch
      %33 = sbr.rel (0) target = $region25
    $region24: #{simple_behavioral_net.1} parent=1 // pred_region
      %35 = dma.done [#allocation3], 2048
    $region25: #{simple_behavioral_net.1} parent=1 // pred_fallthru
      _
    %v37 = vld [vmem:[%s0] sm:$0xf]
    %v38 = vld [vmem:[%s0 + $0x4] sm:$0xf]
    %v39 = vld [vmem:[%s0 + $0x8] sm:$0xf]
    %v40 = vld [vmem:[%s0 + $0xc] sm:$0xf]
    %v41 = vld [vmem:[%s1] sm:$0xf]
    %v42 = vld [vmem:[%s1 + $0x4] sm:$0x1]
    %v43 = vld [vmem:[%s2] sm:$0x1]
    %v45 = vperm.slane %v43, 0
    %v51 = vunpack.c.l.b16 %v37
    %v52 = vunpack.c.l.b16 %v38
    %v53 = vunpack.c.l.b16 %v39
    %v54 = vunpack.c.l.b16 %v40
    %v55 = vpack.c.b16 %v52, %v51
    %v56 = vpack.c.b16 %v54, %v53
    %v59 = vunpack.c.l.b16 %v41
    %v60 = vunpack.c.l.b16 %v42
    %v61 = vpack.c.b16 %v60, %v59
    %vm62 = vcmask 80896
    %v64 = vsel %vm62, %v55, 0
    %v67 = vsel %vm62, %v56, 0
    %vm69 = vcmask 1044480
    %v71 = vsel %vm69, %v61, 0
    %73 = vmatpush.bf16.msra.mxu0 0
    %74 = vmatpush.bf16.msra.mxu0 0
    %75 = vmatpush.bf16.msra.mxu0 0
    %76 = vmatpush.bf16.msra.mxu0 0
    %77 = vmatpush.bf16.msra.mxu0 0
    %78 = vmatpush.bf16.msra.mxu0 0
    %79 = vmatpush.bf16.msra.mxu0 0
    %80 = vmatpush.bf16.msra.mxu0 %v71
    %81 = vmatmul.bf16.gmra.mxu0 %v64
    %v82 = vpop.f32.mrf.mxu0
    %v83 = vadd.f32 %v45, %v82
    %v84 = vpop.f32.mrf.mxu0
    %v85 = vadd.f32 %v45, %v84
    %86 = vmatmul.bf16.gmra.mxu0 %v67
    %v87 = vpop.f32.mrf.mxu0
    %v88 = vadd.f32 %v45, %v87
    %v89 = vpop.f32.mrf.mxu0
    %v90 = vadd.f32 %v45, %v89
    %91 = vdwg.mxu0
    %v92 = vmax.f32 %v83, 0.0
    %v93 = vmax.f32 %v85, 0.0
    %v94 = vmax.f32 %v88, 0.0
    %v95 = vmax.f32 %v90, 0.0
    %v96 = vld [vmem:[#allocation2] sm:$0xff]
    %v97 = vld [vmem:[#allocation2 + $0x8] sm:$0xff]
    %v98 = vld [vmem:[#allocation2 + $0x10] sm:$0xff]
    %v99 = vld [vmem:[#allocation2 + $0x18] sm:$0xff]
    %v100 = vld [vmem:[#allocation2 + $0x20] sm:$0xff]
    %v101 = vld [vmem:[#allocation2 + $0x28] sm:$0xff]
    %v102 = vld [vmem:[#allocation2 + $0x30] sm:$0xff]
    %v103 = vld [vmem:[#allocation2 + $0x38] sm:$0xff]
    %v104 = vld [vmem:[#allocation2 + $0x40] sm:$0xff]
    %v105 = vld [vmem:[#allocation2 + $0x48] sm:$0xff]
    %v106 = vld [vmem:[#allocation2 + $0x50] sm:$0xff]
    %v107 = vld [vmem:[#allocation2 + $0x58] sm:$0xff]
    %v108 = vld [vmem:[#allocation2 + $0x60] sm:$0xff]
    %v109 = vld [vmem:[#allocation2 + $0x68] sm:$0xff]
    %v110 = vld [vmem:[#allocation2 + $0x70] sm:$0xff]
    %v111 = vld [vmem:[#allocation2 + $0x78] sm:$0xff]
    %v112 = vld [vmem:[%s4] sm:$0x1]
    %v114 = vperm.slane %v112, 0
    %116 = vmatpush.msra.mxu0 %v111
    %117 = vmatpush.msra.mxu0 %v110
    %118 = vmatpush.msra.mxu0 %v109
    %119 = vmatpush.msra.mxu0 %v108
    %120 = vmatpush.msra.mxu0 %v107
    %121 = vmatpush.msra.mxu0 %v106
    %122 = vmatpush.msra.mxu0 %v105
    %123 = vmatpush.msra.mxu0 %v104
    %124 = vmatpush.msra.mxu0 %v103
    %125 = vmatpush.msra.mxu0 %v102
    %126 = vmatpush.msra.mxu0 %v101
    %127 = vmatpush.msra.mxu0 %v100
    %128 = vmatpush.msra.mxu0 %v99
    %129 = vmatpush.msra.mxu0 %v98
    %130 = vmatpush.msra.mxu0 %v97
    %131 = vmatpush.msra.mxu0 %v96
    %132 = vmatmul.f32.gmra.mxu0 %v92
    %v133 = vpop.f32.mrf.mxu0
    %v134 = vadd.f32 %v114, %v133
    %135 = vmatmul.f32.gmra.mxu0 %v93
    %v136 = vpop.f32.mrf.mxu0
    %v137 = vadd.f32 %v114, %v136
    %138 = vmatmul.f32.gmra.mxu0 %v94
    %v139 = vpop.f32.mrf.mxu0
    %v140 = vadd.f32 %v114, %v139
    %141 = vmatmul.f32.gmra.mxu0 %v95
    %v142 = vpop.f32.mrf.mxu0
    %v143 = vadd.f32 %v114, %v142
    %144 = vdwg.mxu0
    %v145 = vpack.c.bf16 %v134, %v134
    %v146 = vpack.c.bf16 %v137, %v137
    %v147 = vpack.c.bf16 %v140, %v140
    %v148 = vpack.c.bf16 %v143, %v143
    %149 = vst [vmem:[%s5] sm:$0xf] %v145
    %150 = vst [vmem:[%s5 + $0x4] sm:$0xf] %v146
    %151 = vst [vmem:[%s5 + $0x8] sm:$0xf] %v147
    %152 = vst [vmem:[%s5 + $0xc] sm:$0xf] %v148
    // Predicated region
    $region26: #{simple_behavioral_net.1} parent=1 // pred_check
      _
    $region27: #{simple_behavioral_net.1} parent=1 // pred_check_branch
      %154 = sbr.rel (0) target = $region29
    $region28: #{simple_behavioral_net.1} parent=1 // pred_region
      _
    $region29: #{simple_behavioral_net.1} parent=1 // pred_fallthru
      _
    // Predicated region
    $region30: #{simple_behavioral_net.1} parent=1 // pred_check
      _
    $region31: #{simple_behavioral_net.1} parent=1 // pred_check_branch
      %156 = sbr.rel (0) target = $region33
    $region32: #{simple_behavioral_net.1} parent=1 // pred_region
      _
    $region33: #{simple_behavioral_net.1} parent=1 // pred_fallthru
      _
    %157 = vsyncpa [#allocation3], 1

</llo_original>
